<compile_context>
chip_gen: v7x
topology: tpu7x:2x2x1
jax: 0.10.0
libtpu: 0.0.40
codegen_flags: <defaults>
</compile_context>

<pallas_src>
import functools

import jax
import jax.numpy as jnp
from jax.experimental import pallas as pl
from jax.experimental.pallas import tpu as pltpu


LN_EPS = 1e-5
NEG_SLOPE = 0.2


def _round_up(x, m):
    return (x + m - 1) // m * m


def basic_linear_kernel(x_ref, w_ref, b_ref, g_ref, beta_ref, o_ref, *, out_f):
    # x_ref: (TM, in_f); w_ref: (in_f, out_f_pad); b/g/beta: (1, out_f_pad)
    # Feed native-dtype operands straight to the MXU; accumulate in f32.
    y = jnp.dot(x_ref[...], w_ref[...], preferred_element_type=jnp.float32)
    y = y + b_ref[...].astype(jnp.float32)

    # Valid-column mask for the lane-padded feature dim. Padded columns of y are
    # exactly 0 (padded weight/bias columns are 0), but they must not bias the
    # LayerNorm statistics, so mean/var are computed over the real out_f only.
    out_f_pad = y.shape[-1]
    col = jax.lax.broadcasted_iota(jnp.int32, (1, out_f_pad), 1)
    valid = col < out_f

    inv_n = jnp.float32(1.0 / out_f)
    mean = jnp.sum(y, axis=-1, keepdims=True) * inv_n          # padded cols add 0
    cent = jnp.where(valid, y - mean, 0.0)
    var = jnp.sum(cent * cent, axis=-1, keepdims=True) * inv_n
    y_norm = cent * jax.lax.rsqrt(var + LN_EPS)
    y_norm = y_norm * g_ref[...].astype(jnp.float32) + beta_ref[...].astype(jnp.float32)

    # LeakyReLU(negative_slope=0.2)
    act = jnp.where(y_norm >= 0, y_norm, NEG_SLOPE * y_norm)

    # Dropout: eval-mode identity (deterministic).
    # TODO(synk): training-mode dropout (pltpu.prng_seed + prng_random_bits mask
    #             with 1/(1-p) scaling) not emitted.
    o_ref[...] = act.astype(o_ref.dtype)


def basic_linear_forward(x, batch, w_t, b, gamma, beta, *, tile_rows=512):
    """x: [N, in_f]; batch: [N] int graph id per row; w_t: [in_f, out_f] (W^T)."""
    N, in_f = x.shape
    out_f = w_t.shape[1]

    # The PyTorch per-group LayerNorm loop == stable re-ordering of rows by batch
    # id. Linear + LayerNorm are per-row, so permute the input once up front
    # (x is the smaller tensor) instead of gathering the [N, out_f] output later.
    order = jnp.argsort(batch, stable=True)
    x = jnp.take(x, order, axis=0)

    # Lane-dense output: pad feature dim to a multiple of 128.
    out_f_pad = _round_up(out_f, 128)
    pad_c = out_f_pad - out_f
    if pad_c:
        w_t = jnp.pad(w_t, ((0, 0), (0, pad_c)))
        b = jnp.pad(b, ((0, 0), (0, pad_c)))
        gamma = jnp.pad(gamma, ((0, 0), (0, pad_c)))
        beta = jnp.pad(beta, ((0, 0), (0, pad_c)))

    # Row tile: multiple of 8, capped so double-buffered tiles stay far below the
    # scoped VMEM limits on v5e/v6e/v7x at these feature sizes.
    tm = min(tile_rows, _round_up(N, 8))
    n_pad = _round_up(N, tm)
    if n_pad != N:
        x = jnp.pad(x, ((0, n_pad - N), (0, 0)))

    grid = (n_pad // tm,)

    itemsize = jnp.dtype(x.dtype).itemsize
    cost = pl.CostEstimate(
        flops=2 * n_pad * in_f * out_f_pad,
        transcendentals=n_pad,  # one rsqrt per row
        bytes_accessed=itemsize * (n_pad * in_f + in_f * out_f_pad
                                   + n_pad * out_f_pad + 3 * out_f_pad),
    )

    kernel = functools.partial(basic_linear_kernel, out_f=out_f)

    out = pl.pallas_call(
        kernel,
        out_shape=jax.ShapeDtypeStruct((n_pad, out_f_pad), x.dtype),
        grid=grid,
        in_specs=[
            pl.BlockSpec((tm, in_f), lambda i: (i, 0)),          # x tile (pipelined)
            pl.BlockSpec((in_f, out_f_pad), lambda i: (0, 0)),   # weight, resident
            pl.BlockSpec((1, out_f_pad), lambda i: (0, 0)),      # bias
            pl.BlockSpec((1, out_f_pad), lambda i: (0, 0)),      # LN gamma
            pl.BlockSpec((1, out_f_pad), lambda i: (0, 0)),      # LN beta
        ],
        out_specs=pl.BlockSpec((tm, out_f_pad), lambda i: (i, 0)),
        compiler_params=pltpu.CompilerParams(
            dimension_semantics=("parallel",),
            vmem_limit_bytes=48 * 1024 * 1024,
        ),
        cost_estimate=cost,
    )(x, w_t, b, gamma, beta)

    return out[:N, :out_f]


def _reference(x, batch, w_t, b, gamma, beta):
    """Pure-JAX reference matching the PyTorch forward (eval mode)."""
    y = x @ w_t + b
    mean = jnp.mean(y, axis=-1, keepdims=True)
    var = jnp.mean((y - mean) ** 2, axis=-1, keepdims=True)
    yn = (y - mean) * jax.lax.rsqrt(var + LN_EPS) * gamma + beta
    act = jnp.where(yn >= 0, yn, NEG_SLOPE * yn)
    order = jnp.argsort(batch, stable=True)
    return jnp.take(act, order, axis=0)


if __name__ == "__main__":
    key = jax.random.PRNGKey(0)
    k_x, k_w, k_b = jax.random.split(key, 3)

    N, in_f, out_f = 8, 16, 32
    dropout_rate = 0.1  # unused in eval mode

    x = jax.random.normal(k_x, (N, in_f), dtype=jnp.float32)
    # two graphs: rows 0-3 -> graph 0, rows 4-7 -> graph 1 (sorted, as in PyG)
    batch = jnp.array([0, 0, 0, 0, 1, 1, 1, 1], dtype=jnp.int32)

    # Deterministic parameter init (Linear weight stored transposed [in_f, out_f])
    bound = 1.0 / (in_f ** 0.5)
    w_t = jax.random.uniform(k_w, (in_f, out_f), jnp.float32, -bound, bound)
    b = jax.random.uniform(k_b, (1, out_f), jnp.float32, -bound, bound)
    gamma = jnp.ones((1, out_f), jnp.float32)   # LayerNorm weight init
    beta = jnp.zeros((1, out_f), jnp.float32)   # LayerNorm bias init

    out = basic_linear_forward(x, batch, w_t, b, gamma, beta)
    jax.block_until_ready(out)
    assert out.shape == (N, out_f)

    ref = _reference(x, batch, w_t, b, gamma, beta)
    assert jnp.allclose(out, ref, atol=1e-5, rtol=1e-5), "mismatch vs reference"

    print("KERNEL_OK")
</pallas_src>

<mosaic_0001>
module attributes {stable_mosaic.version = 11 : i64} {
  func.func @basic_linear_kernel(%arg0: i32, %arg1: memref<8x16xf32, #tpu.memory_space<vmem>>, %arg2: memref<16x128xf32, #tpu.memory_space<vmem>>, %arg3: memref<1x128xf32, #tpu.memory_space<vmem>>, %arg4: memref<1x128xf32, #tpu.memory_space<vmem>>, %arg5: memref<1x128xf32, #tpu.memory_space<vmem>>, %arg6: memref<8x128xf32, #tpu.memory_space<vmem>>) attributes {dimension_semantics = [#tpu.dimension_semantics<parallel>], iteration_bounds = array<i64: 1>, scalar_prefetch = 0 : i64, scratch_operands = 0 : i64, tpu.core_type = #tpu.core_type<tc>, window_params = [{transform_indices = @transform_0, window_bounds = array<i64: 8, 16>}, {pipeline_mode = #tpu.pipeline_mode<synchronous>, transform_indices = @transform_1, window_bounds = array<i64: 16, 128>}, {pipeline_mode = #tpu.pipeline_mode<synchronous>, transform_indices = @transform_2, window_bounds = array<i64: 1, 128>}, {pipeline_mode = #tpu.pipeline_mode<synchronous>, transform_indices = @transform_3, window_bounds = array<i64: 1, 128>}, {pipeline_mode = #tpu.pipeline_mode<synchronous>, transform_indices = @transform_4, window_bounds = array<i64: 1, 128>}, {transform_indices = @transform_5, window_bounds = array<i64: 8, 128>}]} {
    %c0 = arith.constant 0 : index
    %c0_0 = arith.constant 0 : index
    %0 = vector.load %arg1[%c0, %c0_0] : memref<8x16xf32, #tpu.memory_space<vmem>>, vector<8x16xf32>
    %c0_1 = arith.constant 0 : index
    %c0_2 = arith.constant 0 : index
    %1 = vector.load %arg2[%c0_1, %c0_2] : memref<16x128xf32, #tpu.memory_space<vmem>>, vector<16x128xf32>
    %cst = arith.constant dense<0.000000e+00> : vector<8x128xf32>
    %2 = tpu.matmul %0, %1, %cst {dimension_numbers = #tpu.dot_dimension_numbers<[1], [0], [0], [1], [0, 0, 1, 1], [], []>} : vector<8x16xf32>, vector<16x128xf32>, vector<8x128xf32> -> vector<8x128xf32>
    %c0_3 = arith.constant 0 : index
    %c0_4 = arith.constant 0 : index
    %3 = vector.load %arg3[%c0_3, %c0_4] : memref<1x128xf32, #tpu.memory_space<vmem>>, vector<1x128xf32>
    %4 = vector.broadcast %3 : vector<1x128xf32> to vector<8x128xf32>
    %5 = arith.addf %2, %4 : vector<8x128xf32>
    %6 = tpu.iota {dimensions = array<i32: 1>} : vector<1x128xi32>
    %c32_i32 = arith.constant 32 : i32
    %7 = vector.broadcast %c32_i32 : i32 to vector<1x128xi32>
    %8 = arith.cmpi slt, %6, %7 : vector<1x128xi32>
    %cst_5 = arith.constant dense<0.000000e+00> : vector<8xf32>
    %9 = vector.multi_reduction <add>, %5, %cst_5 [1] : vector<8x128xf32> to vector<8xf32>
    %10 = vector.shape_cast %9 : vector<8xf32> to vector<8x1xf32>
    %cst_6 = arith.constant 3.125000e-02 : f32
    %11 = vector.broadcast %cst_6 : f32 to vector<8x1xf32>
    %12 = arith.mulf %10, %11 : vector<8x1xf32>
    %13 = vector.broadcast %12 : vector<8x1xf32> to vector<8x128xf32>
    %14 = arith.subf %5, %13 : vector<8x128xf32>
    %cst_7 = arith.constant 0.000000e+00 : f32
    %15 = vector.shape_cast %8 : vector<1x128xi1> to vector<1x128xi1>
    %16 = vector.broadcast %15 : vector<1x128xi1> to vector<8x128xi1>
    %17 = vector.broadcast %cst_7 : f32 to vector<8x128xf32>
    %18 = arith.select %16, %14, %17 : vector<8x128xi1>, vector<8x128xf32>
    %19 = arith.mulf %18, %18 : vector<8x128xf32>
    %cst_8 = arith.constant dense<0.000000e+00> : vector<8xf32>
    %20 = vector.multi_reduction <add>, %19, %cst_8 [1] : vector<8x128xf32> to vector<8xf32>
    %21 = vector.shape_cast %20 : vector<8xf32> to vector<8x1xf32>
    %cst_9 = arith.constant 3.125000e-02 : f32
    %22 = vector.broadcast %cst_9 : f32 to vector<8x1xf32>
    %23 = arith.mulf %21, %22 : vector<8x1xf32>
    %cst_10 = arith.constant 9.99999974E-6 : f32
    %24 = vector.broadcast %cst_10 : f32 to vector<8x1xf32>
    %25 = arith.addf %23, %24 : vector<8x1xf32>
    %26 = math.rsqrt %25 : vector<8x1xf32>
    %27 = vector.broadcast %26 : vector<8x1xf32> to vector<8x128xf32>
    %28 = arith.mulf %18, %27 : vector<8x128xf32>
    %c0_11 = arith.constant 0 : index
    %c0_12 = arith.constant 0 : index
    %29 = vector.load %arg4[%c0_11, %c0_12] : memref<1x128xf32, #tpu.memory_space<vmem>>, vector<1x128xf32>
    %30 = vector.broadcast %29 : vector<1x128xf32> to vector<8x128xf32>
    %31 = arith.mulf %28, %30 : vector<8x128xf32>
    %c0_13 = arith.constant 0 : index
    %c0_14 = arith.constant 0 : index
    %32 = vector.load %arg5[%c0_13, %c0_14] : memref<1x128xf32, #tpu.memory_space<vmem>>, vector<1x128xf32>
    %33 = vector.broadcast %32 : vector<1x128xf32> to vector<8x128xf32>
    %34 = arith.addf %31, %33 : vector<8x128xf32>
    %cst_15 = arith.constant 0.000000e+00 : f32
    %35 = vector.broadcast %cst_15 : f32 to vector<8x128xf32>
    %36 = arith.cmpf oge, %34, %35 : vector<8x128xf32>
    %cst_16 = arith.constant 2.000000e-01 : f32
    %37 = vector.broadcast %cst_16 : f32 to vector<8x128xf32>
    %38 = arith.mulf %37, %34 : vector<8x128xf32>
    %39 = arith.select %36, %34, %38 : vector<8x128xi1>, vector<8x128xf32>
    %c0_17 = arith.constant 0 : index
    %c0_18 = arith.constant 0 : index
    %40 = vector.load %arg6[%c0_17, %c0_18] : memref<8x128xf32, #tpu.memory_space<vmem>>, vector<8x128xf32>
    tpu.vector_store %arg6[%c0_17, %c0_18], %39 {strides = array<i32>} : memref<8x128xf32, #tpu.memory_space<vmem>>, vector<8x128xf32>,
    return
  }
  func.func @transform_0(%arg0: i32) -> (i32, i32) {
    %c0_i32 = arith.constant 0 : i32
    %c0_i32_0 = arith.constant 0 : i32
    return %arg0, %c0_i32 : i32, i32
  }
  func.func @transform_1(%arg0: i32) -> (i32, i32) {
    %c0_i32 = arith.constant 0 : i32
    %c0_i32_0 = arith.constant 0 : i32
    %c0_i32_1 = arith.constant 0 : i32
    return %c0_i32, %c0_i32_0 : i32, i32
  }
  func.func @transform_2(%arg0: i32) -> (i32, i32) {
    %c0_i32 = arith.constant 0 : i32
    %c0_i32_0 = arith.constant 0 : i32
    %c0_i32_1 = arith.constant 0 : i32
    return %c0_i32, %c0_i32_0 : i32, i32
  }
  func.func @transform_3(%arg0: i32) -> (i32, i32) {
    %c0_i32 = arith.constant 0 : i32
    %c0_i32_0 = arith.constant 0 : i32
    %c0_i32_1 = arith.constant 0 : i32
    return %c0_i32, %c0_i32_0 : i32, i32
  }
  func.func @transform_4(%arg0: i32) -> (i32, i32) {
    %c0_i32 = arith.constant 0 : i32
    %c0_i32_0 = arith.constant 0 : i32
    %c0_i32_1 = arith.constant 0 : i32
    return %c0_i32, %c0_i32_0 : i32, i32
  }
  func.func @transform_5(%arg0: i32) -> (i32, i32) {
    %c0_i32 = arith.constant 0 : i32
    %c0_i32_0 = arith.constant 0 : i32
    return %arg0, %c0_i32 : i32, i32
  }
}

</mosaic_0001>

<llo_original>
// kernel: tpu_custom_call.1
$region0: #{tpu_custom_call.1}
  #allocation0 [shape = 'u32[]', space=smem, size = 0x4, offset = 0x4, fixed_abs, tag = 'smem constant byte address 0x4 - core index']
  #allocation1 [shape = 'u32[144,128]{1,0:T(1,128)}', space=vmem, size = 0x12000, scoped, tag = 'internal scratch']
  %s0 = inlined_call_operand.hbm [shape: f32[8,16], index: 0, kind: input, shape index: {}]
  %s1 = inlined_call_operand.hbm [shape: f32[16,128], index: 1, kind: input, shape index: {}]
  %s2 = inlined_call_operand.vmem [shape: f32[1,128], index: 2, kind: input, shape index: {}]
  %s3 = inlined_call_operand.vmem [shape: f32[1,128], index: 3, kind: input, shape index: {}]
  %s4 = inlined_call_operand.vmem [shape: f32[1,128], index: 4, kind: input, shape index: {}]
  %s5 = inlined_call_operand.hbm [shape: f32[8,128], index: 5, kind: output, shape index: {}]
  %s6 = sld [smem:[#allocation0]]
  $region38: #{tpu_custom_call.1} parent=0
    _
  %s8 = ssub.s32 1, %s6
  %s9 = scalar_select 0, %s8, %s6
  $region1: #{tpu_custom_call.1} parent=0
    #allocation2 [shape = 'u8[4096]{0}', space=vmem, size = 0x1000, scoped, tag = 'input window, operand 0, single buffered']
    #allocation3 [shape = 's32[1]{0}', space=sflag, size = 0x4, scoped, tag = 'scoped memory for tpu_custom_call.1']
    #allocation4 [shape = 's32[1]{0}', space=sflag, size = 0x4, scoped, tag = 'scoped memory for tpu_custom_call.1']
    #allocation5 [shape = 'u8[8192]{0}', space=vmem, size = 0x2000, scoped, tag = 'input window, operand 1, single buffered']
    #allocation6 [shape = 's32[1]{0}', space=sflag, size = 0x4, scoped, tag = 'scoped memory for tpu_custom_call.1']
    #allocation7 [shape = 'u8[4096]{0}', space=vmem, size = 0x1000, scoped, tag = 'output window, operand 0, single buffered']
    %10 = vsyncpa [#allocation3], 0
    %11 = vsyncpa [#allocation6], 0
    %12 = vsyncpa [#allocation4], 0
    // Predicated region
    $region2: #{tpu_custom_call.1} parent=1 // pred_check
      _
    $region3: #{tpu_custom_call.1} parent=1 // pred_check_branch
      %14 = sbr.rel (0) target = $region5
    $region4: #{tpu_custom_call.1} parent=1 // pred_region
      %s16 = ssub.s32 128, 128
      %17 = vsyncadd [#allocation3], %s16
      %s19 = sshll.u32 [#allocation2], 4
      %s20 = int_to_ptr.vmem [resolvable:$true] %s19
      %22 = dma.hbm_to_vmem [thread:$0]  %s0, 128, %s20, [#allocation3]
    $region5: #{tpu_custom_call.1} parent=1 // pred_fallthru
      _
    // Predicated region
    $region6: #{tpu_custom_call.1} parent=1 // pred_check
      _
    $region7: #{tpu_custom_call.1} parent=1 // pred_check_branch
      %24 = sbr.rel (0) target = $region9
    $region8: #{tpu_custom_call.1} parent=1 // pred_region
      %s26 = ssub.s32 256, 256
      %27 = vsyncadd [#allocation6], %s26
      %s28 = sshll.u32 [#allocation5], 4
      %s29 = int_to_ptr.vmem [resolvable:$true] %s28
      %34 = dma.hbm_to_vmem [thread:$0]  %s1, 256, %s29, [#allocation6], 128, 128, 8
    $region9: #{tpu_custom_call.1} parent=1 // pred_fallthru
      _
    // Predicated region
    $region10: #{tpu_custom_call.1} parent=1 // pred_check
      _
    $region11: #{tpu_custom_call.1} parent=1 // pred_check_branch
      %36 = sbr.rel (0) target = $region13
    $region12: #{tpu_custom_call.1} parent=1 // pred_region
      _
    $region13: #{tpu_custom_call.1} parent=1 // pred_fallthru
      _
    // Predicated region
    $region14: #{tpu_custom_call.1} parent=1 // pred_check
      _
    $region15: #{tpu_custom_call.1} parent=1 // pred_check_branch
      %38 = sbr.rel (0) target = $region17
    $region16: #{tpu_custom_call.1} parent=1 // pred_region
      _
    $region17: #{tpu_custom_call.1} parent=1 // pred_fallthru
      _
    // Predicated region
    $region18: #{tpu_custom_call.1} parent=1 // pred_check
      _
    $region19: #{tpu_custom_call.1} parent=1 // pred_check_branch
      %40 = sbr.rel (0) target = $region21
    $region20: #{tpu_custom_call.1} parent=1 // pred_region
      _
    $region21: #{tpu_custom_call.1} parent=1 // pred_fallthru
      _
    // Predicated region
    $region22: #{tpu_custom_call.1} parent=1 // pred_check
      _
    $region23: #{tpu_custom_call.1} parent=1 // pred_check_branch
      %42 = sbr.rel (0) target = $region25
    $region24: #{tpu_custom_call.1} parent=1 // pred_region
      %43 = dma.done [#allocation3], 128
    $region25: #{tpu_custom_call.1} parent=1 // pred_fallthru
      _
    // Predicated region
    $region26: #{tpu_custom_call.1} parent=1 // pred_check
      _
    $region27: #{tpu_custom_call.1} parent=1 // pred_check_branch
      %45 = sbr.rel (0) target = $region29
    $region28: #{tpu_custom_call.1} parent=1 // pred_region
      %46 = dma.done [#allocation6], 256
    $region29: #{tpu_custom_call.1} parent=1 // pred_fallthru
      _
    %v47 = vld [vmem:[#allocation2] sm:$0xff]
    %v48 = vld [vmem:[#allocation5] sm:$0xff]
    %v49 = vld [vmem:[#allocation5 + $0x8] sm:$0xff]
    %v50 = vld [vmem:[%s2] sm:$0x1]
    %v52 = vlaneseq
    %v53 = vshrl.u32 %v52, 7
    %v54 = vsub.s32 0, %v53
    %v55 = vrot.slane %v50, %v54
    %vm57 = vcmask 130048
    %v59 = vsel %vm57, %v47, 0
    %61 = vmatprep.subr.mxu0 0.0
    %62 = vmatpush1.msra.mxu0 %v48
    %63 = vmatprep.subr.mxu0 0.0
    %64 = vmatpush1.msra.mxu0 %v49
    %65 = vmatprep.subr.mxu0 0.0
    %66 = vmatpush1.msra.mxu0 0.0
    %67 = vmatprep.subr.mxu0 0.0
    %68 = vmatpush1.msra.mxu0 0.0
    %69 = vmatprep.subr.mxu0 0.0
    %70 = vmatpush1.msra.mxu0 0.0
    %71 = vmatprep.subr.mxu0 0.0
    %72 = vmatpush1.msra.mxu0 0.0
    %73 = vmatprep.subr.mxu0 0.0
    %74 = vmatpush1.msra.mxu0 0.0
    %75 = vmatprep.subr.mxu0 0.0
    %76 = vmatpush1.msra.mxu0 0.0
    %77 = vmatprep.subr.mxu0 0.0
    %78 = vmatpush1.msra.mxu0 0.0
    %79 = vmatprep.subr.mxu0 0.0
    %80 = vmatpush1.msra.mxu0 0.0
    %81 = vmatprep.subr.mxu0 0.0
    %82 = vmatpush1.msra.mxu0 0.0
    %83 = vmatprep.subr.mxu0 0.0
    %84 = vmatpush1.msra.mxu0 0.0
    %85 = vmatprep.subr.mxu0 0.0
    %86 = vmatpush1.msra.mxu0 0.0
    %87 = vmatprep.subr.mxu0 0.0
    %88 = vmatpush1.msra.mxu0 0.0
    %89 = vmatprep.subr.mxu0 0.0
    %90 = vmatpush1.msra.mxu0 0.0
    %91 = vmatprep.subr.mxu0 0.0
    %92 = vmatpush1.msra.mxu0 0.0
    %93 = vmatprep.subr.mxu0 0.0
    %94 = vmatpush1.msra.mxu0 0.0
    %95 = vmatprep.subr.mxu0 0.0
    %96 = vmatpush1.msra.mxu0 0.0
    %97 = vmatprep.subr.mxu0 0.0
    %98 = vmatpush1.msra.mxu0 0.0
    %99 = vmatprep.subr.mxu0 0.0
    %100 = vmatpush1.msra.mxu0 0.0
    %101 = vmatprep.subr.mxu0 0.0
    %102 = vmatpush1.msra.mxu0 0.0
    %103 = vmatprep.subr.mxu0 0.0
    %104 = vmatpush1.msra.mxu0 0.0
    %105 = vmatprep.subr.mxu0 0.0
    %106 = vmatpush1.msra.mxu0 0.0
    %107 = vmatprep.subr.mxu0 0.0
    %108 = vmatpush1.msra.mxu0 0.0
    %109 = vmatprep.subr.mxu0 0.0
    %110 = vmatpush1.msra.mxu0 0.0
    %111 = vmatprep.subr.mxu0 0.0
    %112 = vmatpush1.msra.mxu0 0.0
    %113 = vmatprep.subr.mxu0 0.0
    %114 = vmatpush1.msra.mxu0 0.0
    %115 = vmatprep.subr.mxu0 0.0
    %116 = vmatpush1.msra.mxu0 0.0
    %117 = vmatprep.subr.mxu0 0.0
    %118 = vmatpush1.msra.mxu0 0.0
    %119 = vmatprep.subr.mxu0 0.0
    %120 = vmatpush1.msra.mxu0 0.0
    %121 = vmatprep.subr.mxu0 0.0
    %122 = vmatpush1.msra.mxu0 0.0
    %123 = vmatprep.subr.mxu0 0.0
    %124 = vmatpush1.msra.mxu0 0.0
    %125 = vmatprep.mubr.f32.mxu0 0.0
    %126 = vmatmul.mubr.f32.gmra.mrb[0].mxu0 %v59
    %v127 = vpop.f32.mrb[0].mxu0
    %v128 = vadd.f32 %v55, %v127
    %v129 = vpop.f32.mrb[0].mxu0
    %130 = vdwg.mxu0
    %v131 = vlaneseq
    %v132 = vand.u32 %v131, 127
    %vm133 = vcmp.lt.s32.totalorder %v132, 32
    %134 = vadd.xlane.f32.xlu0 %v128
    %v135 = vpop.xlane.xlu0 %134
    %v136 = vmul.f32 %v135, 0.03125
    %v137 = vsub.f32 %v128, %v136
    %v138 = vsel %vm133, 1, 0
    %vm139 = vcmp.eq.s32.totalorder %v138, 1
    %v140 = vsel %vm139, %v137, 0.0
    %v141 = vmul.f32 %v140, %v140
    %142 = vadd.xlane.f32.xlu0 %v141
    %v143 = vpop.xlane.xlu0 %142
    %v144 = vmul.f32 %v143, 0.03125
    %v145 = vadd.f32 %v144, 1e-05
    %v146 = vrsqrt.pop %v145
    %v147 = vmul.f32 %v140, %v146
    %v148 = vld [vmem:[%s3] sm:$0x1]
    %v150 = vlaneseq
    %v151 = vshrl.u32 %v150, 7
    %v152 = vsub.s32 0, %v151
    %v153 = vrot.slane %v148, %v152
    %v155 = vmul.f32 %v147, %v153
    %v156 = vld [vmem:[%s4] sm:$0x1]
    %v158 = vlaneseq
    %v159 = vshrl.u32 %v158, 7
    %v160 = vsub.s32 0, %v159
    %v161 = vrot.slane %v156, %v160
    %v163 = vadd.f32 %v155, %v161
    %vm164 = vcmp.ge.f32.partialorder %v163, 0.0
    %v165 = vmul.f32 %v163, 0.2
    %v166 = vsel %vm164, %v163, %v165
    %167 = vst [vmem:[#allocation7] sm:$0xff] %v166
    // Predicated region
    $region30: #{tpu_custom_call.1} parent=1 // pred_check
      _
    $region31: #{tpu_custom_call.1} parent=1 // pred_check_branch
      %169 = sbr.rel (0) target = $region33
    $region32: #{tpu_custom_call.1} parent=1 // pred_region
      %s171 = ssub.s32 128, 128
      %172 = vsyncadd [#allocation4], %s171
      %s174 = sshll.u32 [#allocation7], 4
      %s175 = int_to_ptr.vmem [resolvable:$true] %s174
      %177 = dma.vmem_to_hbm [thread:$0]  %s175, 128, %s5, [#allocation4]
    $region33: #{tpu_custom_call.1} parent=1 // pred_fallthru
      _
    // Predicated region
    $region34: #{tpu_custom_call.1} parent=1 // pred_check
      _
    $region35: #{tpu_custom_call.1} parent=1 // pred_check_branch
      %179 = sbr.rel (0) target = $region37
    $region36: #{tpu_custom_call.1} parent=1 // pred_region
      %180 = dma.done [#allocation4], 128
    $region37: #{tpu_custom_call.1} parent=1 // pred_fallthru
      _
    %181 = vsyncpa [#allocation3], 1
    %182 = vsyncpa [#allocation6], 1
    %183 = vsyncpa [#allocation4], 1

</llo_original>
